<compile_context>
chip_gen: v6e
topology: v6e:2x2x1
jax: 0.10.0
libtpu: 0.0.40
codegen_flags: <defaults>
</compile_context>

<pallas_src>
import functools

import jax
import jax.numpy as jnp
from jax.experimental import pallas as pl
from jax.experimental.pallas import tpu as pltpu


def _round_up(x, m):
    return ((x + m - 1) // m) * m


def _cdiv(a, b):
    return (a + b - 1) // b


def _vmem_budget_bytes():
    """Per-generation VMEM budget: ~78% of the per-core VMEM capacity.

    v5e/v6e (128 MiB physical, default scoped limit much lower) -> ~100 MiB;
    v7x (64 MiB per TensorCore) -> ~50 MiB, leaving headroom for Mosaic
    internal scratch, semaphores and DMA metadata.
    """
    cap = 64 * 1024 * 1024  # conservative default = v7x per-TC VMEM
    try:
        info = pltpu.get_tpu_info()
        c = getattr(info, "vmem_capacity_bytes", None)
        if c:
            cap = int(c)
    except Exception:
        pass
    return max(int(cap * 0.78), 32 * 1024 * 1024)


# --------------------------------------------------------------------------
# Kernels
# --------------------------------------------------------------------------
def ffn_resident_kernel(x_ref, w1_ref, b1_ref, w2_ref, b2_ref, o_ref):
    """Weights fully resident in VMEM (constant index_map): one fused pass."""
    h = jnp.dot(x_ref[...], w1_ref[...], preferred_element_type=jnp.float32)
    h = jnp.maximum(h + b1_ref[...], 0.0)        # dropout = identity (eval)
    y = jnp.dot(h.astype(w2_ref.dtype), w2_ref[...],
                preferred_element_type=jnp.float32)
    o_ref[...] = (y + b2_ref[...]).astype(o_ref.dtype)


def ffn_streamed_kernel(x_ref, w1_ref, b1_ref, w2_ref, b2_ref, o_ref,
                        acc_ref=None):
    """d_ff streamed as the trailing (arbitrary) grid axis; accumulate.

    If the output is float32 the accumulation happens directly in o_ref
    (resident across the k axis) and no scratch is allocated.
    """
    k = pl.program_id(1)
    acc = o_ref if acc_ref is None else acc_ref

    @pl.when(k == 0)
    def _():
        acc[...] = jnp.zeros_like(acc)

    h = jnp.dot(x_ref[...], w1_ref[...], preferred_element_type=jnp.float32)
    h = jnp.maximum(h + b1_ref[...], 0.0)        # dropout = identity (eval)
    acc[...] += jnp.dot(h.astype(w2_ref.dtype), w2_ref[...],
                        preferred_element_type=jnp.float32)

    @pl.when(k == pl.num_programs(1) - 1)
    def _():
        if acc_ref is None:
            o_ref[...] += b2_ref[...]
        else:
            o_ref[...] = (acc_ref[...] + b2_ref[...]).astype(o_ref.dtype)


# --------------------------------------------------------------------------
# Wrapper
# --------------------------------------------------------------------------
@functools.partial(jax.jit,
                   static_argnames=("tile_n", "tile_f", "vmem_budget"))
def _positionwise_ffn(x, w1, b1, w2, b2, *, tile_n, tile_f, vmem_budget):
    batch, seq, d_model = x.shape
    d_ff = w1.shape[1]
    n = batch * seq
    out_dtype = x.dtype
    dx = jnp.dtype(x.dtype).itemsize
    dw = jnp.dtype(w1.dtype).itemsize

    # ---- Alignment: lanes need 128; if we must pad, go to 256 (v6e/v7x MXU
    #      is 2x256^2; v5e's 128x128 MXU is unaffected).  Already-aligned dims
    #      are left untouched so the no-pad fast path triggers. ----
    d_model_p = d_model if d_model % 128 == 0 else _round_up(d_model, 256)
    d_ff_al = d_ff if d_ff % 128 == 0 else _round_up(d_ff, 256)

    # Sublane packing for the token axis (8 f32 / 16 bf16 / 32 int8-fp8).
    sub = max(8, 32 // dx)
    n_al = _round_up(n, sub)

    # ---- Initial token tile: big (amortizes weight DMA), but ensure >=2
    #      parallel steps for v7x megacore when there is enough work and the
    #      split doesn't mostly add padded rows. ----
    tn0 = min(tile_n, n_al)
    if n_al > 512 and _cdiv(n_al, tn0) < 2:
        half = _cdiv(n_al, 2)
        cand = _round_up(half, 256)
        if 2 * cand > n_al + max(sub, n_al // 8):   # too much padded compute
            cand = _round_up(half, sub)
        tn0 = min(n_al, max(sub, cand))

    tn_cands = sorted({min(t, n_al) for t in (tn0, 1024, 512, 256)
                       if min(t, n_al) <= tn0}, reverse=True)

    budget = int(vmem_budget)
    need_acc = out_dtype != jnp.float32

    def resident_fp(tn):
        w = 2 * 2 * d_model_p * d_ff_al * dw       # w1 + w2, double-buffered
        b = 2 * 8 * (d_ff_al + d_model_p) * dw     # bias rows (sublane pad)
        xb = 2 * tn * d_model_p * dx               # x tile (double-buffered)
        ob = 2 * tn * d_model_p * dx               # out tile
        hb = tn * d_ff_al * 4                      # f32 hidden intermediate
        return int((w + b + xb + ob + hb) * 1.15)

    def streamed_fp(tn, tf):
        w = 2 * 2 * d_model_p * tf * dw
        b = 2 * 8 * (tf + d_model_p) * dw
        xb = 2 * tn * d_model_p * dx
        ob = 2 * tn * d_model_p * dx
        ac = tn * d_model_p * 4 if need_acc else 0
        hb = tn * tf * 4
        return int((w + b + xb + ob + ac + hb) * 1.15)

    # ---- Choose path + tiles from the VMEM budget (never clamp the limit
    #      below what the tiles need). ----
    resident = False
    tile_n_eff = tn_cands[-1]
    tile_f_eff = d_ff_al
    for tn in tn_cands:
        if resident_fp(tn) <= budget:
            resident, tile_n_eff = True, tn
            break

    if not resident:
        tf_cands = sorted({t for t in (min(_round_up(max(tile_f, 128), 128),
                                           d_ff_al), 512, 256, 128)
                           if 128 <= t <= d_ff_al}, reverse=True)
        chosen = None
        for tn in tn_cands:                 # keep token tile big: weight reuse
            for tf in tf_cands:             # shrink tile_f first, then tile_n
                if streamed_fp(tn, tf) <= budget:
                    chosen = (tn, tf)
                    break
            if chosen is not None:
                break
        if chosen is None:
            # Extreme shapes: smallest tiling; Mosaic may spill but compiles.
            chosen = (tn_cands[-1], tf_cands[-1])
        tile_n_eff, tile_f_eff = chosen

    d_ff_p = d_ff_al if resident else _round_up(d_ff_al, tile_f_eff)
    n_p = _round_up(n_al, tile_n_eff)

    # ---- Pad only when needed (aligned transformer shapes skip these extra
    #      HBM round-trips entirely). ----
    x2d = x.reshape(n, d_model)
    if n_p != n or d_model_p != d_model:
        x2d = jnp.pad(x2d, ((0, n_p - n), (0, d_model_p - d_model)))
    w1_p = w1 if (d_model_p == d_model and d_ff_p == d_ff) else jnp.pad(
        w1, ((0, d_model_p - d_model), (0, d_ff_p - d_ff)))
    w2_p = w2 if (d_model_p == d_model and d_ff_p == d_ff) else jnp.pad(
        w2, ((0, d_ff_p - d_ff), (0, d_model_p - d_model)))
    b1_p = (b1 if d_ff_p == d_ff else
            jnp.pad(b1, (0, d_ff_p - d_ff))).reshape(1, d_ff_p)
    b2_p = (b2 if d_model_p == d_model else
            jnp.pad(b2, (0, d_model_p - d_model))).reshape(1, d_model_p)

    n_tiles = n_p // tile_n_eff
    weight_passes = 1 if resident else n_tiles      # weight re-reads (streamed)
    cost = pl.CostEstimate(
        flops=4 * n * d_model * d_ff,               # two matmuls, 2 flops/MAC
        transcendentals=0,
        bytes_accessed=(n_p * d_model_p * dx * 2                    # x, y
                        + weight_passes * 2 * d_model_p * d_ff_p * dw
                        + (d_ff_p + d_model_p) * dw),               # biases
    )

    if resident:
        grid_spec = pltpu.PrefetchScalarGridSpec(
            num_scalar_prefetch=0,
            grid=(n_tiles,),
            in_specs=[
                pl.BlockSpec((tile_n_eff, d_model_p), lambda i: (i, 0)),
                # Full weight slabs, constant block index -> DMA'd once.
                pl.BlockSpec((d_model_p, d_ff_p), lambda i: (0, 0)),
                pl.BlockSpec((1, d_ff_p), lambda i: (0, 0)),
                pl.BlockSpec((d_ff_p, d_model_p), lambda i: (0, 0)),
                pl.BlockSpec((1, d_model_p), lambda i: (0, 0)),
            ],
            out_specs=pl.BlockSpec((tile_n_eff, d_model_p), lambda i: (i, 0)),
            scratch_shapes=[],
        )
        kernel = ffn_resident_kernel
        dim_sem = ("parallel",)
    else:
        grid_spec = pltpu.PrefetchScalarGridSpec(
            num_scalar_prefetch=0,
            grid=(n_tiles, d_ff_p // tile_f_eff),
            in_specs=[
                pl.BlockSpec((tile_n_eff, d_model_p), lambda i, k: (i, 0)),
                pl.BlockSpec((d_model_p, tile_f_eff), lambda i, k: (0, k)),
                pl.BlockSpec((1, tile_f_eff), lambda i, k: (0, k)),
                pl.BlockSpec((tile_f_eff, d_model_p), lambda i, k: (k, 0)),
                pl.BlockSpec((1, d_model_p), lambda i, k: (0, 0)),
            ],
            out_specs=pl.BlockSpec((tile_n_eff, d_model_p),
                                   lambda i, k: (i, 0)),
            scratch_shapes=(
                [pltpu.VMEM((tile_n_eff, d_model_p), jnp.float32)]
                if need_acc else []),
        )
        kernel = ffn_streamed_kernel
        dim_sem = ("parallel", "arbitrary")

    out2d = pl.pallas_call(
        kernel,
        out_shape=jax.ShapeDtypeStruct((n_p, d_model_p), out_dtype),
        grid_spec=grid_spec,
        compiler_params=pltpu.CompilerParams(
            dimension_semantics=dim_sem,
            vmem_limit_bytes=budget,
        ),
        cost_estimate=cost,
    )(x2d, w1_p, b1_p, w2_p, b2_p)

    if n_p == n and d_model_p == d_model:
        return out2d.reshape(batch, seq, d_model)
    return out2d[:n, :d_model].reshape(batch, seq, d_model)


def positionwise_ffn(x, w1, b1, w2, b2, *, tile_n=1024, tile_f=512):
    """x: (batch, seq, d_model). w1: (d_model, d_ff), w2: (d_ff, d_model).

    (PyTorch Linear stores weight as (out, in); pass the transposed (in, out)
    layout here.)  Dropout is identity (eval/inference semantics).
    """
    return _positionwise_ffn(x, w1, b1, w2, b2, tile_n=int(tile_n),
                             tile_f=int(tile_f),
                             vmem_budget=_vmem_budget_bytes())


def _reference(x, w1, b1, w2, b2):
    hi = jax.lax.Precision.HIGHEST
    h = jnp.maximum(jnp.einsum("bsd,df->bsf", x, w1, precision=hi) + b1, 0.0)
    return jnp.einsum("bsf,fd->bsd", h, w2, precision=hi) + b2


if __name__ == "__main__":
    # Small, module-consistent shapes.
    batch, seq, d_model, d_ff = 2, 8, 32, 64

    key = jax.random.PRNGKey(0)
    k_x, k_w1, k_b1, k_w2, k_b2 = jax.random.split(key, 5)

    x = jax.random.normal(k_x, (batch, seq, d_model), dtype=jnp.float32)

    bound1 = 1.0 / (d_model ** 0.5)
    bound2 = 1.0 / (d_ff ** 0.5)
    w1 = jax.random.uniform(k_w1, (d_model, d_ff), jnp.float32, -bound1, bound1)
    b1 = jax.random.uniform(k_b1, (d_ff,), jnp.float32, -bound1, bound1)
    w2 = jax.random.uniform(k_w2, (d_ff, d_model), jnp.float32, -bound2, bound2)
    b2 = jax.random.uniform(k_b2, (d_model,), jnp.float32, -bound2, bound2)

    y = positionwise_ffn(x, w1, b1, w2, b2)
    y = jax.block_until_ready(y)

    y_ref = _reference(x, w1, b1, w2, b2)
    assert y.shape == (batch, seq, d_model)
    assert jnp.allclose(y, y_ref, atol=1e-3, rtol=1e-3), "mismatch vs reference"

    print("KERNEL_OK")
</pallas_src>

<mosaic_0001>
module attributes {stable_mosaic.version = 11 : i64} {
  func.func @ffn_resident_kernel(%arg0: i32, %arg1: memref<16x256xf32, #tpu.memory_space<vmem>>, %arg2: memref<256x256xf32, #tpu.memory_space<vmem>>, %arg3: memref<1x256xf32, #tpu.memory_space<vmem>>, %arg4: memref<256x256xf32, #tpu.memory_space<vmem>>, %arg5: memref<1x256xf32, #tpu.memory_space<vmem>>, %arg6: memref<16x256xf32, #tpu.memory_space<vmem>>) attributes {dimension_semantics = [#tpu.dimension_semantics<parallel>], iteration_bounds = array<i64: 1>, scalar_prefetch = 0 : i64, scratch_operands = 0 : i64, tpu.core_type = #tpu.core_type<tc>, window_params = [{transform_indices = @transform_0, window_bounds = array<i64: 16, 256>}, {pipeline_mode = #tpu.pipeline_mode<synchronous>, transform_indices = @transform_1, window_bounds = array<i64: 256, 256>}, {pipeline_mode = #tpu.pipeline_mode<synchronous>, transform_indices = @transform_2, window_bounds = array<i64: 1, 256>}, {pipeline_mode = #tpu.pipeline_mode<synchronous>, transform_indices = @transform_3, window_bounds = array<i64: 256, 256>}, {pipeline_mode = #tpu.pipeline_mode<synchronous>, transform_indices = @transform_4, window_bounds = array<i64: 1, 256>}, {transform_indices = @transform_5, window_bounds = array<i64: 16, 256>}]} {
    %c0 = arith.constant 0 : index
    %c0_0 = arith.constant 0 : index
    %0 = vector.load %arg1[%c0, %c0_0] : memref<16x256xf32, #tpu.memory_space<vmem>>, vector<16x256xf32>
    %c0_1 = arith.constant 0 : index
    %c0_2 = arith.constant 0 : index
    %1 = vector.load %arg2[%c0_1, %c0_2] : memref<256x256xf32, #tpu.memory_space<vmem>>, vector<256x256xf32>
    %cst = arith.constant dense<0.000000e+00> : vector<16x256xf32>
    %2 = tpu.matmul %0, %1, %cst {dimension_numbers = #tpu.dot_dimension_numbers<[1], [0], [0], [1], [0, 0, 1, 1], [], []>} : vector<16x256xf32>, vector<256x256xf32>, vector<16x256xf32> -> vector<16x256xf32>
    %c0_3 = arith.constant 0 : index
    %c0_4 = arith.constant 0 : index
    %3 = vector.load %arg3[%c0_3, %c0_4] : memref<1x256xf32, #tpu.memory_space<vmem>>, vector<1x256xf32>
    %4 = vector.broadcast %3 : vector<1x256xf32> to vector<16x256xf32>
    %5 = arith.addf %2, %4 : vector<16x256xf32>
    %cst_5 = arith.constant 0.000000e+00 : f32
    %6 = vector.broadcast %cst_5 : f32 to vector<16x256xf32>
    %7 = arith.maximumf %5, %6 : vector<16x256xf32>
    %c0_6 = arith.constant 0 : index
    %c0_7 = arith.constant 0 : index
    %8 = vector.load %arg4[%c0_6, %c0_7] : memref<256x256xf32, #tpu.memory_space<vmem>>, vector<256x256xf32>
    %cst_8 = arith.constant dense<0.000000e+00> : vector<16x256xf32>
    %9 = tpu.matmul %7, %8, %cst_8 {dimension_numbers = #tpu.dot_dimension_numbers<[1], [0], [0], [1], [0, 0, 1, 1], [], []>} : vector<16x256xf32>, vector<256x256xf32>, vector<16x256xf32> -> vector<16x256xf32>
    %c0_9 = arith.constant 0 : index
    %c0_10 = arith.constant 0 : index
    %10 = vector.load %arg5[%c0_9, %c0_10] : memref<1x256xf32, #tpu.memory_space<vmem>>, vector<1x256xf32>
    %11 = vector.broadcast %10 : vector<1x256xf32> to vector<16x256xf32>
    %12 = arith.addf %9, %11 : vector<16x256xf32>
    %c0_11 = arith.constant 0 : index
    %c0_12 = arith.constant 0 : index
    %13 = vector.load %arg6[%c0_11, %c0_12] : memref<16x256xf32, #tpu.memory_space<vmem>>, vector<16x256xf32>
    tpu.vector_store %arg6[%c0_11, %c0_12], %12 {strides = array<i32>} : memref<16x256xf32, #tpu.memory_space<vmem>>, vector<16x256xf32>,
    return
  }
  func.func @transform_0(%arg0: i32) -> (i32, i32) {
    %c0_i32 = arith.constant 0 : i32
    %c0_i32_0 = arith.constant 0 : i32
    return %arg0, %c0_i32 : i32, i32
  }
  func.func @transform_1(%arg0: i32) -> (i32, i32) {
    %c0_i32 = arith.constant 0 : i32
    %c0_i32_0 = arith.constant 0 : i32
    %c0_i32_1 = arith.constant 0 : i32
    return %c0_i32, %c0_i32_0 : i32, i32
  }
  func.func @transform_2(%arg0: i32) -> (i32, i32) {
    %c0_i32 = arith.constant 0 : i32
    %c0_i32_0 = arith.constant 0 : i32
    %c0_i32_1 = arith.constant 0 : i32
    return %c0_i32, %c0_i32_0 : i32, i32
  }
  func.func @transform_3(%arg0: i32) -> (i32, i32) {
    %c0_i32 = arith.constant 0 : i32
    %c0_i32_0 = arith.constant 0 : i32
    %c0_i32_1 = arith.constant 0 : i32
    return %c0_i32, %c0_i32_0 : i32, i32
  }
  func.func @transform_4(%arg0: i32) -> (i32, i32) {
    %c0_i32 = arith.constant 0 : i32
    %c0_i32_0 = arith.constant 0 : i32
    %c0_i32_1 = arith.constant 0 : i32
    return %c0_i32, %c0_i32_0 : i32, i32
  }
  func.func @transform_5(%arg0: i32) -> (i32, i32) {
    %c0_i32 = arith.constant 0 : i32
    %c0_i32_0 = arith.constant 0 : i32
    return %arg0, %c0_i32 : i32, i32
  }
}

</mosaic_0001>

<llo_original>
// kernel: _positionwise_ffn.1
$region0: #{_positionwise_ffn.1}
  #allocation0 [shape = 'u32[]', space=smem, size = 0x4, offset = 0x4, fixed_abs, tag = 'smem constant byte address 0x4 - core index']
  #allocation1 [shape = 'u32[144,128]{1,0:T(1,128)}', space=vmem, size = 0x12000, scoped, tag = 'internal scratch']
  %s0 = inlined_call_operand.vmem [shape: f32[16,256], index: 0, kind: input, shape index: {}]
  %s1 = inlined_call_operand.vmem [shape: f32[256,256], index: 1, kind: input, shape index: {}]
  %s2 = inlined_call_operand.vmem [shape: f32[1,256], index: 2, kind: input, shape index: {}]
  %s3 = inlined_call_operand.vmem [shape: f32[256,256], index: 3, kind: input, shape index: {}]
  %s4 = inlined_call_operand.vmem [shape: f32[1,256], index: 4, kind: input, shape index: {}]
  %s5 = inlined_call_operand.vmem [shape: f32[16,256], index: 5, kind: output, shape index: {}]
  %s6 = sld [smem:[#allocation0]]
  $region30: #{_positionwise_ffn.1} parent=0
    _
  %s8 = ssub.s32 1, %s6
  %s9 = scalar_select 0, %s8, %s6
  // Predicated region
  $region2: #{_positionwise_ffn.1} parent=0 // pred_check
    _
  $region3: #{_positionwise_ffn.1} parent=0 // pred_check_branch
    %11 = sbr.rel (0) target = $region5
  $region4: #{_positionwise_ffn.1} parent=0 // pred_region
    _
  $region5: #{_positionwise_ffn.1} parent=0 // pred_fallthru
    _
  // Predicated region
  $region6: #{_positionwise_ffn.1} parent=0 // pred_check
    _
  $region7: #{_positionwise_ffn.1} parent=0 // pred_check_branch
    %13 = sbr.rel (0) target = $region9
  $region8: #{_positionwise_ffn.1} parent=0 // pred_region
    _
  $region9: #{_positionwise_ffn.1} parent=0 // pred_fallthru
    _
  // Predicated region
  $region10: #{_positionwise_ffn.1} parent=0 // pred_check
    _
  $region11: #{_positionwise_ffn.1} parent=0 // pred_check_branch
    %15 = sbr.rel (0) target = $region13
  $region12: #{_positionwise_ffn.1} parent=0 // pred_region
    _
  $region13: #{_positionwise_ffn.1} parent=0 // pred_fallthru
    _
  // Predicated region
  $region14: #{_positionwise_ffn.1} parent=0 // pred_check
    _
  $region15: #{_positionwise_ffn.1} parent=0 // pred_check_branch
    %17 = sbr.rel (0) target = $region17
  $region16: #{_positionwise_ffn.1} parent=0 // pred_region
    _
  $region17: #{_positionwise_ffn.1} parent=0 // pred_fallthru
    _
  // Predicated region
  $region18: #{_positionwise_ffn.1} parent=0 // pred_check
    _
  $region19: #{_positionwise_ffn.1} parent=0 // pred_check_branch
    %19 = sbr.rel (0) target = $region21
  $region20: #{_positionwise_ffn.1} parent=0 // pred_region
    _
  $region21: #{_positionwise_ffn.1} parent=0 // pred_fallthru
    _
  %v20 = vld [vmem:[%s0] sm:$0xff]
  %v21 = vld [vmem:[%s0 + $0x8] sm:$0xff]
  %v22 = vld [vmem:[%s0 + $0x10] sm:$0xff]
  %v23 = vld [vmem:[%s0 + $0x18] sm:$0xff]
  %v24 = vld [vmem:[%s1] sm:$0xff]
  %v25 = vld [vmem:[%s1 + $0x8] sm:$0xff]
  %v26 = vld [vmem:[%s1 + $0x10] sm:$0xff]
  %v27 = vld [vmem:[%s1 + $0x18] sm:$0xff]
  %v28 = vld [vmem:[%s1 + $0x20] sm:$0xff]
  %v29 = vld [vmem:[%s1 + $0x28] sm:$0xff]
  %v30 = vld [vmem:[%s1 + $0x30] sm:$0xff]
  %v31 = vld [vmem:[%s1 + $0x38] sm:$0xff]
  %v32 = vld [vmem:[%s1 + $0x40] sm:$0xff]
  %v33 = vld [vmem:[%s1 + $0x48] sm:$0xff]
  %v34 = vld [vmem:[%s1 + $0x50] sm:$0xff]
  %v35 = vld [vmem:[%s1 + $0x58] sm:$0xff]
  %v36 = vld [vmem:[%s1 + $0x60] sm:$0xff]
  %v37 = vld [vmem:[%s1 + $0x68] sm:$0xff]
  %v38 = vld [vmem:[%s1 + $0x70] sm:$0xff]
  %v39 = vld [vmem:[%s1 + $0x78] sm:$0xff]
  %v40 = vld [vmem:[%s1 + $0x80] sm:$0xff]
  %v41 = vld [vmem:[%s1 + $0x88] sm:$0xff]
  %v42 = vld [vmem:[%s1 + $0x90] sm:$0xff]
  %v43 = vld [vmem:[%s1 + $0x98] sm:$0xff]
  %v44 = vld [vmem:[%s1 + $0xa0] sm:$0xff]
  %v45 = vld [vmem:[%s1 + $0xa8] sm:$0xff]
  %v46 = vld [vmem:[%s1 + $0xb0] sm:$0xff]
  %v47 = vld [vmem:[%s1 + $0xb8] sm:$0xff]
  %v48 = vld [vmem:[%s1 + $0xc0] sm:$0xff]
  %v49 = vld [vmem:[%s1 + $0xc8] sm:$0xff]
  %v50 = vld [vmem:[%s1 + $0xd0] sm:$0xff]
  %v51 = vld [vmem:[%s1 + $0xd8] sm:$0xff]
  %v52 = vld [vmem:[%s1 + $0xe0] sm:$0xff]
  %v53 = vld [vmem:[%s1 + $0xe8] sm:$0xff]
  %v54 = vld [vmem:[%s1 + $0xf0] sm:$0xff]
  %v55 = vld [vmem:[%s1 + $0xf8] sm:$0xff]
  %v56 = vld [vmem:[%s1 + $0x100] sm:$0xff]
  %v57 = vld [vmem:[%s1 + $0x108] sm:$0xff]
  %v58 = vld [vmem:[%s1 + $0x110] sm:$0xff]
  %v59 = vld [vmem:[%s1 + $0x118] sm:$0xff]
  %v60 = vld [vmem:[%s1 + $0x120] sm:$0xff]
  %v61 = vld [vmem:[%s1 + $0x128] sm:$0xff]
  %v62 = vld [vmem:[%s1 + $0x130] sm:$0xff]
  %v63 = vld [vmem:[%s1 + $0x138] sm:$0xff]
  %v64 = vld [vmem:[%s1 + $0x140] sm:$0xff]
  %v65 = vld [vmem:[%s1 + $0x148] sm:$0xff]
  %v66 = vld [vmem:[%s1 + $0x150] sm:$0xff]
  %v67 = vld [vmem:[%s1 + $0x158] sm:$0xff]
  %v68 = vld [vmem:[%s1 + $0x160] sm:$0xff]
  %v69 = vld [vmem:[%s1 + $0x168] sm:$0xff]
  %v70 = vld [vmem:[%s1 + $0x170] sm:$0xff]
  %v71 = vld [vmem:[%s1 + $0x178] sm:$0xff]
  %v72 = vld [vmem:[%s1 + $0x180] sm:$0xff]
  %v73 = vld [vmem:[%s1 + $0x188] sm:$0xff]
  %v74 = vld [vmem:[%s1 + $0x190] sm:$0xff]
  %v75 = vld [vmem:[%s1 + $0x198] sm:$0xff]
  %v76 = vld [vmem:[%s1 + $0x1a0] sm:$0xff]
  %v77 = vld [vmem:[%s1 + $0x1a8] sm:$0xff]
  %v78 = vld [vmem:[%s1 + $0x1b0] sm:$0xff]
  %v79 = vld [vmem:[%s1 + $0x1b8] sm:$0xff]
  %v80 = vld [vmem:[%s1 + $0x1c0] sm:$0xff]
  %v81 = vld [vmem:[%s1 + $0x1c8] sm:$0xff]
  %v82 = vld [vmem:[%s1 + $0x1d0] sm:$0xff]
  %v83 = vld [vmem:[%s1 + $0x1d8] sm:$0xff]
  %v84 = vld [vmem:[%s1 + $0x1e0] sm:$0xff]
  %v85 = vld [vmem:[%s1 + $0x1e8] sm:$0xff]
  %v86 = vld [vmem:[%s1 + $0x1f0] sm:$0xff]
  %v87 = vld [vmem:[%s1 + $0x1f8] sm:$0xff]
  %v88 = vld [vmem:[%s2] sm:$0x3]
  %v90 = vlaneseq
  %v91 = vshrl.u32 %v90, 7
  %v92 = vsub.s32 0, %v91
  %v93 = vrot.slane %v88, %v92
  %v94 = vlaneseq
  %v95 = vshrl.u32 %v94, 7
  %v96 = vsub.s32 1, %v95
  %v97 = vrot.slane %v88, %v96
  %100 = vmatprep.subr.mxu0 %v55
  %101 = vmatpush1.msra.mxu0 %v54
  %102 = vmatprep.subr.mxu0 %v53
  %103 = vmatpush1.msra.mxu0 %v52
  %104 = vmatprep.subr.mxu0 %v51
  %105 = vmatpush1.msra.mxu0 %v50
  %106 = vmatprep.subr.mxu0 %v49
  %107 = vmatpush1.msra.mxu0 %v48
  %108 = vmatprep.subr.mxu0 %v47
  %109 = vmatpush1.msra.mxu0 %v46
  %110 = vmatprep.subr.mxu0 %v45
  %111 = vmatpush1.msra.mxu0 %v44
  %112 = vmatprep.subr.mxu0 %v43
  %113 = vmatpush1.msra.mxu0 %v42
  %114 = vmatprep.subr.mxu0 %v41
  %115 = vmatpush1.msra.mxu0 %v40
  %116 = vmatprep.subr.mxu0 %v39
  %117 = vmatpush1.msra.mxu0 %v38
  %118 = vmatprep.subr.mxu0 %v37
  %119 = vmatpush1.msra.mxu0 %v36
  %120 = vmatprep.subr.mxu0 %v35
  %121 = vmatpush1.msra.mxu0 %v34
  %122 = vmatprep.subr.mxu0 %v33
  %123 = vmatpush1.msra.mxu0 %v32
  %124 = vmatprep.subr.mxu0 %v31
  %125 = vmatpush1.msra.mxu0 %v30
  %126 = vmatprep.subr.mxu0 %v29
  %127 = vmatpush1.msra.mxu0 %v28
  %128 = vmatprep.subr.mxu0 %v27
  %129 = vmatpush1.msra.mxu0 %v26
  %130 = vmatprep.subr.mxu0 %v25
  %131 = vmatpush1.msra.mxu0 %v24
  %132 = vmatprep.subr.mxu0 %v87
  %133 = vmatpush2.msra.mxu0 %v86
  %134 = vmatprep.subr.mxu0 %v85
  %135 = vmatpush2.msra.mxu0 %v84
  %136 = vmatprep.subr.mxu0 %v83
  %137 = vmatpush2.msra.mxu0 %v82
  %138 = vmatprep.subr.mxu0 %v81
  %139 = vmatpush2.msra.mxu0 %v80
  %140 = vmatprep.subr.mxu0 %v79
  %141 = vmatpush2.msra.mxu0 %v78
  %142 = vmatprep.subr.mxu0 %v77
  %143 = vmatpush2.msra.mxu0 %v76
  %144 = vmatprep.subr.mxu0 %v75
  %145 = vmatpush2.msra.mxu0 %v74
  %146 = vmatprep.subr.mxu0 %v73
  %147 = vmatpush2.msra.mxu0 %v72
  %148 = vmatprep.subr.mxu0 %v71
  %149 = vmatpush2.msra.mxu0 %v70
  %150 = vmatprep.subr.mxu0 %v69
  %151 = vmatpush2.msra.mxu0 %v68
  %152 = vmatprep.subr.mxu0 %v67
  %153 = vmatpush2.msra.mxu0 %v66
  %154 = vmatprep.subr.mxu0 %v65
  %155 = vmatpush2.msra.mxu0 %v64
  %156 = vmatprep.subr.mxu0 %v63
  %157 = vmatpush2.msra.mxu0 %v62
  %158 = vmatprep.subr.mxu0 %v61
  %159 = vmatpush2.msra.mxu0 %v60
  %160 = vmatprep.subr.mxu0 %v59
  %161 = vmatpush2.msra.mxu0 %v58
  %162 = vmatprep.subr.mxu0 %v57
  %163 = vmatpush2.msra.mxu0 %v56
  %164 = vmatprep.mubr.f32.mxu0 %v21
  %165 = vmatmul.mubr.f32.gmra.mxu0 %v20
  %v166 = vpop.f32.mrf.mxu0
  %v167 = vadd.f32 %v93, %v166
  %v168 = vpop.f32.mrf.mxu0
  %v169 = vadd.f32 %v97, %v168
  %170 = vmatprep.mubr.f32.mxu0 %v23
  %171 = vmatmul.mubr.f32.gmra.mxu0 %v22
  %v172 = vpop.f32.mrf.mxu0
  %v173 = vadd.f32 %v93, %v172
  %v174 = vpop.f32.mrf.mxu0
  %v175 = vadd.f32 %v97, %v174
  %176 = vdwg.mxu0
  %v177 = vmax.f32 %v167, 0.0
  %v178 = vmax.f32 %v169, 0.0
  %v179 = vmax.f32 %v173, 0.0
  %v180 = vmax.f32 %v175, 0.0
  %v181 = vld [vmem:[%s3] sm:$0xff]
  %v182 = vld [vmem:[%s3 + $0x8] sm:$0xff]
  %v183 = vld [vmem:[%s3 + $0x10] sm:$0xff]
  %v184 = vld [vmem:[%s3 + $0x18] sm:$0xff]
  %v185 = vld [vmem:[%s3 + $0x20] sm:$0xff]
  %v186 = vld [vmem:[%s3 + $0x28] sm:$0xff]
  %v187 = vld [vmem:[%s3 + $0x30] sm:$0xff]
  %v188 = vld [vmem:[%s3 + $0x38] sm:$0xff]
  %v189 = vld [vmem:[%s3 + $0x40] sm:$0xff]
  %v190 = vld [vmem:[%s3 + $0x48] sm:$0xff]
  %v191 = vld [vmem:[%s3 + $0x50] sm:$0xff]
  %v192 = vld [vmem:[%s3 + $0x58] sm:$0xff]
  %v193 = vld [vmem:[%s3 + $0x60] sm:$0xff]
  %v194 = vld [vmem:[%s3 + $0x68] sm:$0xff]
  %v195 = vld [vmem:[%s3 + $0x70] sm:$0xff]
  %v196 = vld [vmem:[%s3 + $0x78] sm:$0xff]
  %v197 = vld [vmem:[%s3 + $0x80] sm:$0xff]
  %v198 = vld [vmem:[%s3 + $0x88] sm:$0xff]
  %v199 = vld [vmem:[%s3 + $0x90] sm:$0xff]
  %v200 = vld [vmem:[%s3 + $0x98] sm:$0xff]
  %v201 = vld [vmem:[%s3 + $0xa0] sm:$0xff]
  %v202 = vld [vmem:[%s3 + $0xa8] sm:$0xff]
  %v203 = vld [vmem:[%s3 + $0xb0] sm:$0xff]
  %v204 = vld [vmem:[%s3 + $0xb8] sm:$0xff]
  %v205 = vld [vmem:[%s3 + $0xc0] sm:$0xff]
  %v206 = vld [vmem:[%s3 + $0xc8] sm:$0xff]
  %v207 = vld [vmem:[%s3 + $0xd0] sm:$0xff]
  %v208 = vld [vmem:[%s3 + $0xd8] sm:$0xff]
  %v209 = vld [vmem:[%s3 + $0xe0] sm:$0xff]
  %v210 = vld [vmem:[%s3 + $0xe8] sm:$0xff]
  %v211 = vld [vmem:[%s3 + $0xf0] sm:$0xff]
  %v212 = vld [vmem:[%s3 + $0xf8] sm:$0xff]
  %v213 = vld [vmem:[%s3 + $0x100] sm:$0xff]
  %v214 = vld [vmem:[%s3 + $0x108] sm:$0xff]
  %v215 = vld [vmem:[%s3 + $0x110] sm:$0xff]
  %v216 = vld [vmem:[%s3 + $0x118] sm:$0xff]
  %v217 = vld [vmem:[%s3 + $0x120] sm:$0xff]
  %v218 = vld [vmem:[%s3 + $0x128] sm:$0xff]
  %v219 = vld [vmem:[%s3 + $0x130] sm:$0xff]
  %v220 = vld [vmem:[%s3 + $0x138] sm:$0xff]
  %v221 = vld [vmem:[%s3 + $0x140] sm:$0xff]
  %v222 = vld [vmem:[%s3 + $0x148] sm:$0xff]
  %v223 = vld [vmem:[%s3 + $0x150] sm:$0xff]
  %v224 = vld [vmem:[%s3 + $0x158] sm:$0xff]
  %v225 = vld [vmem:[%s3 + $0x160] sm:$0xff]
  %v226 = vld [vmem:[%s3 + $0x168] sm:$0xff]
  %v227 = vld [vmem:[%s3 + $0x170] sm:$0xff]
  %v228 = vld [vmem:[%s3 + $0x178] sm:$0xff]
  %v229 = vld [vmem:[%s3 + $0x180] sm:$0xff]
  %v230 = vld [vmem:[%s3 + $0x188] sm:$0xff]
  %v231 = vld [vmem:[%s3 + $0x190] sm:$0xff]
  %v232 = vld [vmem:[%s3 + $0x198] sm:$0xff]
  %v233 = vld [vmem:[%s3 + $0x1a0] sm:$0xff]
  %v234 = vld [vmem:[%s3 + $0x1a8] sm:$0xff]
  %v235 = vld [vmem:[%s3 + $0x1b0] sm:$0xff]
  %v236 = vld [vmem:[%s3 + $0x1b8] sm:$0xff]
  %v237 = vld [vmem:[%s3 + $0x1c0] sm:$0xff]
  %v238 = vld [vmem:[%s3 + $0x1c8] sm:$0xff]
  %v239 = vld [vmem:[%s3 + $0x1d0] sm:$0xff]
  %v240 = vld [vmem:[%s3 + $0x1d8] sm:$0xff]
  %v241 = vld [vmem:[%s3 + $0x1e0] sm:$0xff]
  %v242 = vld [vmem:[%s3 + $0x1e8] sm:$0xff]
  %v243 = vld [vmem:[%s3 + $0x1f0] sm:$0xff]
  %v244 = vld [vmem:[%s3 + $0x1f8] sm:$0xff]
  %v245 = vld [vmem:[%s4] sm:$0x3]
  %v247 = vlaneseq
  %v248 = vshrl.u32 %v247, 7
  %v249 = vsub.s32 0, %v248
  %v250 = vrot.slane %v245, %v249
  %v251 = vlaneseq
  %v252 = vshrl.u32 %v251, 7
  %v253 = vsub.s32 1, %v252
  %v254 = vrot.slane %v245, %v253
  %257 = vmatprep.subr.mxu0 %v212
  %258 = vmatpush1.msra.mxu0 %v211
  %259 = vmatprep.subr.mxu0 %v210
  %260 = vmatpush1.msra.mxu0 %v209
  %261 = vmatprep.subr.mxu0 %v208
  %262 = vmatpush1.msra.mxu0 %v207
  %263 = vmatprep.subr.mxu0 %v206
  %264 = vmatpush1.msra.mxu0 %v205
  %265 = vmatprep.subr.mxu0 %v204
  %266 = vmatpush1.msra.mxu0 %v203
  %267 = vmatprep.subr.mxu0 %v202
  %268 = vmatpush1.msra.mxu0 %v201
  %269 = vmatprep.subr.mxu0 %v200
  %270 = vmatpush1.msra.mxu0 %v199
  %271 = vmatprep.subr.mxu0 %v198
  %272 = vmatpush1.msra.mxu0 %v197
  %273 = vmatprep.subr.mxu0 %v196
  %274 = vmatpush1.msra.mxu0 %v195
  %275 = vmatprep.subr.mxu0 %v194
  %276 = vmatpush1.msra.mxu0 %v193
  %277 = vmatprep.subr.mxu0 %v192
  %278 = vmatpush1.msra.mxu0 %v191
  %279 = vmatprep.subr.mxu0 %v190
  %280 = vmatpush1.msra.mxu0 %v189
  %281 = vmatprep.subr.mxu0 %v188
  %282 = vmatpush1.msra.mxu0 %v187
  %283 = vmatprep.subr.mxu0 %v186
  %284 = vmatpush1.msra.mxu0 %v185
  %285 = vmatprep.subr.mxu0 %v184
  %286 = vmatpush1.msra.mxu0 %v183
  %287 = vmatprep.subr.mxu0 %v182
  %288 = vmatpush1.msra.mxu0 %v181
  %289 = vmatprep.subr.mxu0 %v244
  %290 = vmatpush2.msra.mxu0 %v243
  %291 = vmatprep.subr.mxu0 %v242
  %292 = vmatpush2.msra.mxu0 %v241
  %293 = vmatprep.subr.mxu0 %v240
  %294 = vmatpush2.msra.mxu0 %v239
  %295 = vmatprep.subr.mxu0 %v238
  %296 = vmatpush2.msra.mxu0 %v237
  %297 = vmatprep.subr.mxu0 %v236
  %298 = vmatpush2.msra.mxu0 %v235
  %299 = vmatprep.subr.mxu0 %v234
  %300 = vmatpush2.msra.mxu0 %v233
  %301 = vmatprep.subr.mxu0 %v232
  %302 = vmatpush2.msra.mxu0 %v231
  %303 = vmatprep.subr.mxu0 %v230
  %304 = vmatpush2.msra.mxu0 %v229
  %305 = vmatprep.subr.mxu0 %v228
  %306 = vmatpush2.msra.mxu0 %v227
  %307 = vmatprep.subr.mxu0 %v226
  %308 = vmatpush2.msra.mxu0 %v225
  %309 = vmatprep.subr.mxu0 %v224
  %310 = vmatpush2.msra.mxu0 %v223
  %311 = vmatprep.subr.mxu0 %v222
  %312 = vmatpush2.msra.mxu0 %v221
  %313 = vmatprep.subr.mxu0 %v220
  %314 = vmatpush2.msra.mxu0 %v219
  %315 = vmatprep.subr.mxu0 %v218
  %316 = vmatpush2.msra.mxu0 %v217
  %317 = vmatprep.subr.mxu0 %v216
  %318 = vmatpush2.msra.mxu0 %v215
  %319 = vmatprep.subr.mxu0 %v214
  %320 = vmatpush2.msra.mxu0 %v213
  %321 = vmatprep.mubr.f32.mxu0 %v178
  %322 = vmatmul.mubr.f32.gmra.mxu0 %v177
  %v323 = vpop.f32.mrf.mxu0
  %v324 = vadd.f32 %v250, %v323
  %v325 = vpop.f32.mrf.mxu0
  %v326 = vadd.f32 %v254, %v325
  %327 = vmatprep.mubr.f32.mxu0 %v180
  %328 = vmatmul.mubr.f32.gmra.mxu0 %v179
  %v329 = vpop.f32.mrf.mxu0
  %v330 = vadd.f32 %v250, %v329
  %v331 = vpop.f32.mrf.mxu0
  %v332 = vadd.f32 %v254, %v331
  %333 = vdwg.mxu0
  %334 = vst [vmem:[%s5] sm:$0xff] %v324
  %335 = vst [vmem:[%s5 + $0x8] sm:$0xff] %v326
  %336 = vst [vmem:[%s5 + $0x10] sm:$0xff] %v330
  %337 = vst [vmem:[%s5 + $0x18] sm:$0xff] %v332
  // Predicated region
  $region22: #{_positionwise_ffn.1} parent=0 // pred_check
    _
  $region23: #{_positionwise_ffn.1} parent=0 // pred_check_branch
    %339 = sbr.rel (0) target = $region25
  $region24: #{_positionwise_ffn.1} parent=0 // pred_region
    _
  $region25: #{_positionwise_ffn.1} parent=0 // pred_fallthru
    _
  // Predicated region
  $region26: #{_positionwise_ffn.1} parent=0 // pred_check
    _
  $region27: #{_positionwise_ffn.1} parent=0 // pred_check_branch
    %341 = sbr.rel (0) target = $region29
  $region28: #{_positionwise_ffn.1} parent=0 // pred_region
    _
  $region29: #{_positionwise_ffn.1} parent=0 // pred_fallthru
    _

</llo_original>
